<compile_context>
chip_gen: v6e
topology: v6e:2x2x1
jax: 0.10.0
libtpu: 0.0.40
codegen_flags: <defaults>
</compile_context>

<pallas_src>
import functools

import jax
import jax.numpy as jnp
from jax.experimental import pallas as pl
from jax.experimental.pallas import tpu as pltpu

BN_EPS = 1e-5        # nn.BatchNorm2d default
L2_EPS = 1e-12       # F.normalize default
VMEM_LIMIT = 32 * 1024 * 1024   # safe on v5e/v6e/v7x; blocks here are far smaller


def _pick_token_tile(hw, target):
    """Largest tile <= target that is a multiple of 128 and divides hw
    (or the full row when hw is small / has no such divisor)."""
    if hw <= target:
        return hw
    t = (target // 128) * 128
    while t >= 128:
        if hw % t == 0:
            return t
        t -= 128
    # TODO(synk): pad/mask the spatial axis instead of one big block per row.
    return hw


# ---- pass 1: global per-channel sum / sum-of-squares of a = W1 @ x ----------
def _stats_kernel(x_ref, w1_ref, sum_ref, sq_ref):
    # x_ref: (1, C, tT) f32   w1_ref: (C, C) bf16
    # sum_ref, sq_ref: (C, 1) f32 accumulators, resident across the whole grid
    @pl.when((pl.program_id(0) == 0) & (pl.program_id(1) == 0))
    def _():
        sum_ref[...] = jnp.zeros_like(sum_ref)
        sq_ref[...] = jnp.zeros_like(sq_ref)

    xb = x_ref[0].astype(jnp.bfloat16)                                 # (C, tT)
    a = jnp.dot(w1_ref[...], xb, preferred_element_type=jnp.float32)   # (C, tT) f32
    sum_ref[...] += jnp.sum(a, axis=1, keepdims=True)
    sq_ref[...] += jnp.sum(a * a, axis=1, keepdims=True)


# ---- pass 2: conv1 -> folded BN scale/shift -> ReLU -> conv2 -> L2 norm -----
def _apply_kernel(x_ref, w1_ref, scale_ref, shift_ref, w2_ref, b2_ref, o_ref):
    # x_ref: (1, C, tT)  scale/shift: (C, 1) f32  w2_ref: (P, C) bf16
    # b2_ref: (P, 1) f32  o_ref: (1, P, tT) f32
    xb = x_ref[0].astype(jnp.bfloat16)
    a = jnp.dot(w1_ref[...], xb, preferred_element_type=jnp.float32)   # (C, tT)
    h = jnp.maximum(a * scale_ref[...] + shift_ref[...], 0.0)          # BN + ReLU, f32
    y = jnp.dot(w2_ref[...], h.astype(jnp.bfloat16),
                preferred_element_type=jnp.float32) + b2_ref[...]      # (P, tT)
    ssq = jnp.sum(y * y, axis=0, keepdims=True)                        # (1, tT)
    inv = jax.lax.rsqrt(jnp.maximum(ssq, L2_EPS * L2_EPS))             # EUP rsqrt
    o_ref[0] = (y * inv).astype(o_ref.dtype)


@functools.partial(jax.jit, static_argnames=("token_tile",))
def projection_head(x_nchw, params, *, token_tile=2048):
    """x_nchw: (N, C, H, W) f32 -> (N, P, H, W) f32 (matches PyTorch forward)."""
    N, C, H, W = x_nchw.shape
    P = params["w2"].shape[0]
    HW = H * W
    tT = _pick_token_tile(HW, token_tile)
    grid = (N, HW // tT)

    x3 = x_nchw.reshape(N, C, HW)                     # free reshape, no transpose
    w1 = params["w1"].astype(jnp.bfloat16)            # (Cout=C, Cin=C) == torch weight[:,:,0,0]
    w2 = params["w2"].astype(jnp.bfloat16)            # (P, C)

    x_spec = pl.BlockSpec((1, C, tT), lambda n, s: (n, 0, s))
    w1_spec = pl.BlockSpec((C, C), lambda n, s: (0, 0))
    col_c = pl.BlockSpec((C, 1), lambda n, s: (0, 0))
    w2_spec = pl.BlockSpec((P, C), lambda n, s: (0, 0))
    col_p = pl.BlockSpec((P, 1), lambda n, s: (0, 0))

    # ---------------- pass 1: global BN statistics ----------------
    sum_a, sumsq_a = pl.pallas_call(
        _stats_kernel,
        out_shape=(jax.ShapeDtypeStruct((C, 1), jnp.float32),
                   jax.ShapeDtypeStruct((C, 1), jnp.float32)),
        grid_spec=pltpu.PrefetchScalarGridSpec(
            num_scalar_prefetch=0,
            grid=grid,
            in_specs=[x_spec, w1_spec],
            out_specs=[col_c, col_c]),
        compiler_params=pltpu.CompilerParams(
            dimension_semantics=("arbitrary", "arbitrary"),   # global accumulator
            vmem_limit_bytes=VMEM_LIMIT),
    )(x3, w1)

    # Fold BN (training-mode batch stats) + affine into one scale/shift (tiny f32 math).
    T = N * HW
    mean_a = sum_a / T
    var = jnp.maximum(sumsq_a / T - mean_a * mean_a, 0.0)    # biased var (PyTorch fwd)
    inv_std = jax.lax.rsqrt(var + BN_EPS)
    gamma = params["gamma"].reshape(C, 1).astype(jnp.float32)
    beta = params["beta"].reshape(C, 1).astype(jnp.float32)
    scale = gamma * inv_std
    # conv1's bias shifts h and its batch mean identically, so it cancels under
    # training-mode BatchNorm and never needs to enter the kernels.
    shift = beta - mean_a * scale
    b2 = params["b2"].reshape(P, 1).astype(jnp.float32)

    cost = pl.CostEstimate(
        flops=2 * T * C * (C + P),
        transcendentals=T,
        bytes_accessed=T * C * 4 + T * P * 4 + (C * C + P * C) * 2 + (2 * C + P) * 4,
    )

    # ---------------- pass 2: apply ----------------
    out3 = pl.pallas_call(
        _apply_kernel,
        out_shape=jax.ShapeDtypeStruct((N, P, HW), jnp.float32),
        grid_spec=pltpu.PrefetchScalarGridSpec(
            num_scalar_prefetch=0,
            grid=grid,
            in_specs=[x_spec, w1_spec, col_c, col_c, w2_spec, col_p],
            out_specs=pl.BlockSpec((1, P, tT), lambda n, s: (n, 0, s))),
        compiler_params=pltpu.CompilerParams(
            dimension_semantics=("parallel", "parallel"),     # megacore-friendly
            vmem_limit_bytes=VMEM_LIMIT),
        cost_estimate=cost,
    )(x3, w1, scale, shift, w2, b2)

    return out3.reshape(N, P, H, W)


def projection_head_reference(x_nchw, params):
    """Pure-JAX f32 reference of the same training-mode forward."""
    N, C, H, W = x_nchw.shape
    P = params["w2"].shape[0]
    x = x_nchw.reshape(N, C, H * W)
    h = jnp.einsum("oc,ncs->nos", params["w1"], x) + params["b1"][None, :, None]
    mean = jnp.mean(h, axis=(0, 2), keepdims=True)
    var = jnp.mean((h - mean) ** 2, axis=(0, 2), keepdims=True)
    h = (h - mean) * jax.lax.rsqrt(var + BN_EPS)
    h = h * params["gamma"][None, :, None] + params["beta"][None, :, None]
    h = jnp.maximum(h, 0.0)
    y = jnp.einsum("oc,ncs->nos", params["w2"], h) + params["b2"][None, :, None]
    norm = jnp.sqrt(jnp.sum(y * y, axis=1, keepdims=True))
    y = y / jnp.maximum(norm, L2_EPS)
    return y.reshape(N, P, H, W)


def init_params(key, dim_in, proj_dim):
    """Deterministic synthetic parameters, PyTorch layouts (Cout, Cin) for the
    1x1 convs. BatchNorm running_mean/running_var buffers are unused in the
    training-mode forward, so they are not materialized."""
    k1, k2, k3, k4, k5, k6 = jax.random.split(key, 6)
    s1 = 1.0 / jnp.sqrt(dim_in)
    return {
        "w1": jax.random.uniform(k1, (dim_in, dim_in), jnp.float32, -s1, s1),
        "b1": jax.random.uniform(k2, (dim_in,), jnp.float32, -s1, s1),
        "gamma": 1.0 + 0.1 * jax.random.normal(k3, (dim_in,), jnp.float32),
        "beta": 0.1 * jax.random.normal(k4, (dim_in,), jnp.float32),
        "w2": jax.random.uniform(k5, (proj_dim, dim_in), jnp.float32, -s1, s1),
        "b2": jax.random.uniform(k6, (proj_dim,), jnp.float32, -s1, s1),
    }


if __name__ == "__main__":
    key = jax.random.PRNGKey(0)
    kx, kp = jax.random.split(key)

    N, C, H, W = 2, 32, 8, 8       # dim_in = 32
    proj_dim = 64

    x = jax.random.normal(kx, (N, C, H, W), jnp.float32)
    params = init_params(kp, C, proj_dim)

    out = jax.block_until_ready(projection_head(x, params))
    ref = projection_head_reference(x, params)

    assert out.shape == (N, proj_dim, H, W), out.shape
    # bf16 MXU operands loosen the tolerance vs the f32 reference.
    max_err = float(jnp.max(jnp.abs(out - ref)))
    assert jnp.allclose(out, ref, atol=3e-2, rtol=3e-2), f"mismatch, max_err={max_err}"

    print("KERNEL_OK")
</pallas_src>

<mosaic_0001>
module attributes {stable_mosaic.version = 11 : i64} {
  func.func @_stats_kernel(%arg0: i32, %arg1: i32, %arg2: memref<1x32x64xf32, #tpu.memory_space<vmem>>, %arg3: memref<32x32xbf16, #tpu.memory_space<vmem>>, %arg4: memref<32x1xf32, #tpu.memory_space<vmem>>, %arg5: memref<32x1xf32, #tpu.memory_space<vmem>>) attributes {dimension_semantics = [#tpu.dimension_semantics<arbitrary>, #tpu.dimension_semantics<arbitrary>], iteration_bounds = array<i64: 2, 1>, scalar_prefetch = 0 : i64, scratch_operands = 0 : i64, tpu.core_type = #tpu.core_type<tc>, window_params = [{transform_indices = @transform_0, window_bounds = array<i64: 1, 32, 64>}, {pipeline_mode = #tpu.pipeline_mode<synchronous>, transform_indices = @transform_1, window_bounds = array<i64: 32, 32>}, {pipeline_mode = #tpu.pipeline_mode<synchronous>, transform_indices = @transform_2, window_bounds = array<i64: 32, 1>}, {pipeline_mode = #tpu.pipeline_mode<synchronous>, transform_indices = @transform_3, window_bounds = array<i64: 32, 1>}]} {
    %c0_i32 = arith.constant 0 : i32
    %0 = arith.cmpi eq, %arg0, %c0_i32 : i32
    %c0_i32_0 = arith.constant 0 : i32
    %1 = arith.cmpi eq, %arg1, %c0_i32_0 : i32
    %2 = arith.andi %0, %1 : i1
    %3 = arith.extui %2 : i1 to i32
    %c0_i32_1 = arith.constant 0 : i32
    %4 = arith.cmpi ne, %3, %c0_i32_1 : i32
    scf.if %4 {
      %cst_16 = arith.constant 0.000000e+00 : f32
      %21 = vector.broadcast %cst_16 : f32 to vector<32x1xf32>
      %c0_17 = arith.constant 0 : index
      %c0_18 = arith.constant 0 : index
      %22 = vector.load %arg4[%c0_17, %c0_18] : memref<32x1xf32, #tpu.memory_space<vmem>>, vector<32x1xf32>
      tpu.vector_store %arg4[%c0_17, %c0_18], %21 {strides = array<i32>} : memref<32x1xf32, #tpu.memory_space<vmem>>, vector<32x1xf32>,
      %cst_19 = arith.constant 0.000000e+00 : f32
      %23 = vector.broadcast %cst_19 : f32 to vector<32x1xf32>
      %c0_20 = arith.constant 0 : index
      %c0_21 = arith.constant 0 : index
      %24 = vector.load %arg5[%c0_20, %c0_21] : memref<32x1xf32, #tpu.memory_space<vmem>>, vector<32x1xf32>
      tpu.vector_store %arg5[%c0_20, %c0_21], %23 {strides = array<i32>} : memref<32x1xf32, #tpu.memory_space<vmem>>, vector<32x1xf32>,
    } else {
    }
    %c0 = arith.constant 0 : index
    %c0_2 = arith.constant 0 : index
    %c0_3 = arith.constant 0 : index
    %5 = vector.load %arg2[%c0, %c0_2, %c0_3] : memref<1x32x64xf32, #tpu.memory_space<vmem>>, vector<1x32x64xf32>
    %6 = vector.shape_cast %5 : vector<1x32x64xf32> to vector<32x64xf32>
    %7 = arith.truncf %6 : vector<32x64xf32> to vector<32x64xbf16>
    %c0_4 = arith.constant 0 : index
    %c0_5 = arith.constant 0 : index
    %8 = vector.load %arg3[%c0_4, %c0_5] : memref<32x32xbf16, #tpu.memory_space<vmem>>, vector<32x32xbf16>
    %cst = arith.constant dense<0.000000e+00> : vector<32x64xf32>
    %9 = tpu.matmul %8, %7, %cst {dimension_numbers = #tpu.dot_dimension_numbers<[1], [0], [0], [1], [0, 0, 1, 1], [], []>} : vector<32x32xbf16>, vector<32x64xbf16>, vector<32x64xf32> -> vector<32x64xf32>
    %c0_6 = arith.constant 0 : index
    %c0_7 = arith.constant 0 : index
    %10 = vector.load %arg4[%c0_6, %c0_7] : memref<32x1xf32, #tpu.memory_space<vmem>>, vector<32x1xf32>
    %cst_8 = arith.constant dense<0.000000e+00> : vector<32xf32>
    %11 = vector.multi_reduction <add>, %9, %cst_8 [1] : vector<32x64xf32> to vector<32xf32>
    %12 = vector.shape_cast %11 : vector<32xf32> to vector<32x1xf32>
    %13 = arith.addf %10, %12 : vector<32x1xf32>
    %c0_9 = arith.constant 0 : index
    %c0_10 = arith.constant 0 : index
    %14 = vector.load %arg4[%c0_9, %c0_10] : memref<32x1xf32, #tpu.memory_space<vmem>>, vector<32x1xf32>
    tpu.vector_store %arg4[%c0_9, %c0_10], %13 {strides = array<i32>} : memref<32x1xf32, #tpu.memory_space<vmem>>, vector<32x1xf32>,
    %c0_11 = arith.constant 0 : index
    %c0_12 = arith.constant 0 : index
    %15 = vector.load %arg5[%c0_11, %c0_12] : memref<32x1xf32, #tpu.memory_space<vmem>>, vector<32x1xf32>
    %16 = arith.mulf %9, %9 : vector<32x64xf32>
    %cst_13 = arith.constant dense<0.000000e+00> : vector<32xf32>
    %17 = vector.multi_reduction <add>, %16, %cst_13 [1] : vector<32x64xf32> to vector<32xf32>
    %18 = vector.shape_cast %17 : vector<32xf32> to vector<32x1xf32>
    %19 = arith.addf %15, %18 : vector<32x1xf32>
    %c0_14 = arith.constant 0 : index
    %c0_15 = arith.constant 0 : index
    %20 = vector.load %arg5[%c0_14, %c0_15] : memref<32x1xf32, #tpu.memory_space<vmem>>, vector<32x1xf32>
    tpu.vector_store %arg5[%c0_14, %c0_15], %19 {strides = array<i32>} : memref<32x1xf32, #tpu.memory_space<vmem>>, vector<32x1xf32>,
    return
  }
  func.func @transform_0(%arg0: i32, %arg1: i32) -> (i32, i32, i32) {
    %c0_i32 = arith.constant 0 : i32
    %c0_i32_0 = arith.constant 0 : i32
    return %arg0, %c0_i32, %arg1 : i32, i32, i32
  }
  func.func @transform_1(%arg0: i32, %arg1: i32) -> (i32, i32) {
    %c0_i32 = arith.constant 0 : i32
    %c0_i32_0 = arith.constant 0 : i32
    %c0_i32_1 = arith.constant 0 : i32
    return %c0_i32, %c0_i32_0 : i32, i32
  }
  func.func @transform_2(%arg0: i32, %arg1: i32) -> (i32, i32) {
    %c0_i32 = arith.constant 0 : i32
    %c0_i32_0 = arith.constant 0 : i32
    %c0_i32_1 = arith.constant 0 : i32
    return %c0_i32, %c0_i32_0 : i32, i32
  }
  func.func @transform_3(%arg0: i32, %arg1: i32) -> (i32, i32) {
    %c0_i32 = arith.constant 0 : i32
    %c0_i32_0 = arith.constant 0 : i32
    %c0_i32_1 = arith.constant 0 : i32
    return %c0_i32, %c0_i32_0 : i32, i32
  }
}

module attributes {stable_mosaic.version = 11 : i64} {
  func.func @_apply_kernel(%arg0: i32, %arg1: i32, %arg2: memref<1x32x64xf32, #tpu.memory_space<vmem>>, %arg3: memref<32x32xbf16, #tpu.memory_space<vmem>>, %arg4: memref<32x1xf32, #tpu.memory_space<vmem>>, %arg5: memref<32x1xf32, #tpu.memory_space<vmem>>, %arg6: memref<64x32xbf16, #tpu.memory_space<vmem>>, %arg7: memref<64x1xf32, #tpu.memory_space<vmem>>, %arg8: memref<1x64x64xf32, #tpu.memory_space<vmem>>) attributes {dimension_semantics = [#tpu.dimension_semantics<parallel>, #tpu.dimension_semantics<parallel>], iteration_bounds = array<i64: 2, 1>, scalar_prefetch = 0 : i64, scratch_operands = 0 : i64, tpu.core_type = #tpu.core_type<tc>, window_params = [{transform_indices = @transform_0, window_bounds = array<i64: 1, 32, 64>}, {pipeline_mode = #tpu.pipeline_mode<synchronous>, transform_indices = @transform_1, window_bounds = array<i64: 32, 32>}, {pipeline_mode = #tpu.pipeline_mode<synchronous>, transform_indices = @transform_2, window_bounds = array<i64: 32, 1>}, {pipeline_mode = #tpu.pipeline_mode<synchronous>, transform_indices = @transform_3, window_bounds = array<i64: 32, 1>}, {pipeline_mode = #tpu.pipeline_mode<synchronous>, transform_indices = @transform_4, window_bounds = array<i64: 64, 32>}, {pipeline_mode = #tpu.pipeline_mode<synchronous>, transform_indices = @transform_5, window_bounds = array<i64: 64, 1>}, {transform_indices = @transform_6, window_bounds = array<i64: 1, 64, 64>}]} {
    %c0 = arith.constant 0 : index
    %c0_0 = arith.constant 0 : index
    %c0_1 = arith.constant 0 : index
    %0 = vector.load %arg2[%c0, %c0_0, %c0_1] : memref<1x32x64xf32, #tpu.memory_space<vmem>>, vector<1x32x64xf32>
    %1 = vector.shape_cast %0 : vector<1x32x64xf32> to vector<32x64xf32>
    %2 = arith.truncf %1 : vector<32x64xf32> to vector<32x64xbf16>
    %c0_2 = arith.constant 0 : index
    %c0_3 = arith.constant 0 : index
    %3 = vector.load %arg3[%c0_2, %c0_3] : memref<32x32xbf16, #tpu.memory_space<vmem>>, vector<32x32xbf16>
    %cst = arith.constant dense<0.000000e+00> : vector<32x64xf32>
    %4 = tpu.matmul %3, %2, %cst {dimension_numbers = #tpu.dot_dimension_numbers<[1], [0], [0], [1], [0, 0, 1, 1], [], []>} : vector<32x32xbf16>, vector<32x64xbf16>, vector<32x64xf32> -> vector<32x64xf32>
    %c0_4 = arith.constant 0 : index
    %c0_5 = arith.constant 0 : index
    %5 = vector.load %arg4[%c0_4, %c0_5] : memref<32x1xf32, #tpu.memory_space<vmem>>, vector<32x1xf32>
    %6 = vector.broadcast %5 : vector<32x1xf32> to vector<32x64xf32>
    %7 = arith.mulf %4, %6 : vector<32x64xf32>
    %c0_6 = arith.constant 0 : index
    %c0_7 = arith.constant 0 : index
    %8 = vector.load %arg5[%c0_6, %c0_7] : memref<32x1xf32, #tpu.memory_space<vmem>>, vector<32x1xf32>
    %9 = vector.broadcast %8 : vector<32x1xf32> to vector<32x64xf32>
    %10 = arith.addf %7, %9 : vector<32x64xf32>
    %cst_8 = arith.constant 0.000000e+00 : f32
    %11 = vector.broadcast %cst_8 : f32 to vector<32x64xf32>
    %12 = arith.maximumf %10, %11 : vector<32x64xf32>
    %c0_9 = arith.constant 0 : index
    %c0_10 = arith.constant 0 : index
    %13 = vector.load %arg6[%c0_9, %c0_10] : memref<64x32xbf16, #tpu.memory_space<vmem>>, vector<64x32xbf16>
    %14 = arith.truncf %12 : vector<32x64xf32> to vector<32x64xbf16>
    %cst_11 = arith.constant dense<0.000000e+00> : vector<64x64xf32>
    %15 = tpu.matmul %13, %14, %cst_11 {dimension_numbers = #tpu.dot_dimension_numbers<[1], [0], [0], [1], [0, 0, 1, 1], [], []>} : vector<64x32xbf16>, vector<32x64xbf16>, vector<64x64xf32> -> vector<64x64xf32>
    %c0_12 = arith.constant 0 : index
    %c0_13 = arith.constant 0 : index
    %16 = vector.load %arg7[%c0_12, %c0_13] : memref<64x1xf32, #tpu.memory_space<vmem>>, vector<64x1xf32>
    %17 = vector.broadcast %16 : vector<64x1xf32> to vector<64x64xf32>
    %18 = arith.addf %15, %17 : vector<64x64xf32>
    %19 = arith.mulf %18, %18 : vector<64x64xf32>
    %cst_14 = arith.constant dense<0.000000e+00> : vector<64xf32>
    %20 = vector.multi_reduction <add>, %19, %cst_14 [0] : vector<64x64xf32> to vector<64xf32>
    %21 = vector.shape_cast %20 : vector<64xf32> to vector<1x64xf32>
    %cst_15 = arith.constant 1.000000e-24 : f32
    %22 = vector.broadcast %cst_15 : f32 to vector<1x64xf32>
    %23 = arith.maximumf %21, %22 : vector<1x64xf32>
    %24 = math.rsqrt %23 : vector<1x64xf32>
    %25 = vector.broadcast %24 : vector<1x64xf32> to vector<64x64xf32>
    %26 = arith.mulf %18, %25 : vector<64x64xf32>
    %c0_16 = arith.constant 0 : index
    %c0_17 = arith.constant 0 : index
    %c0_18 = arith.constant 0 : index
    %27 = vector.load %arg8[%c0_16, %c0_17, %c0_18] : memref<1x64x64xf32, #tpu.memory_space<vmem>>, vector<1x64x64xf32>
    %28 = vector.shape_cast %27 : vector<1x64x64xf32> to vector<64x64xf32>
    %29 = vector.shape_cast %26 : vector<64x64xf32> to vector<1x64x64xf32>
    tpu.vector_store %arg8[%c0_16, %c0_17, %c0_18], %29 {strides = array<i32>} : memref<1x64x64xf32, #tpu.memory_space<vmem>>, vector<1x64x64xf32>,
    return
  }
  func.func @transform_0(%arg0: i32, %arg1: i32) -> (i32, i32, i32) {
    %c0_i32 = arith.constant 0 : i32
    %c0_i32_0 = arith.constant 0 : i32
    return %arg0, %c0_i32, %arg1 : i32, i32, i32
  }
  func.func @transform_1(%arg0: i32, %arg1: i32) -> (i32, i32) {
    %c0_i32 = arith.constant 0 : i32
    %c0_i32_0 = arith.constant 0 : i32
    %c0_i32_1 = arith.constant 0 : i32
    return %c0_i32, %c0_i32_0 : i32, i32
  }
  func.func @transform_2(%arg0: i32, %arg1: i32) -> (i32, i32) {
    %c0_i32 = arith.constant 0 : i32
    %c0_i32_0 = arith.constant 0 : i32
    %c0_i32_1 = arith.constant 0 : i32
    return %c0_i32, %c0_i32_0 : i32, i32
  }
  func.func @transform_3(%arg0: i32, %arg1: i32) -> (i32, i32) {
    %c0_i32 = arith.constant 0 : i32
    %c0_i32_0 = arith.constant 0 : i32
    %c0_i32_1 = arith.constant 0 : i32
    return %c0_i32, %c0_i32_0 : i32, i32
  }
  func.func @transform_4(%arg0: i32, %arg1: i32) -> (i32, i32) {
    %c0_i32 = arith.constant 0 : i32
    %c0_i32_0 = arith.constant 0 : i32
    %c0_i32_1 = arith.constant 0 : i32
    return %c0_i32, %c0_i32_0 : i32, i32
  }
  func.func @transform_5(%arg0: i32, %arg1: i32) -> (i32, i32) {
    %c0_i32 = arith.constant 0 : i32
    %c0_i32_0 = arith.constant 0 : i32
    %c0_i32_1 = arith.constant 0 : i32
    return %c0_i32, %c0_i32_0 : i32, i32
  }
  func.func @transform_6(%arg0: i32, %arg1: i32) -> (i32, i32, i32) {
    %c0_i32 = arith.constant 0 : i32
    %c0_i32_0 = arith.constant 0 : i32
    return %arg0, %c0_i32, %arg1 : i32, i32, i32
  }
}

</mosaic_0001>

<llo_original>
// kernel: projection_head.2
$region0: #{projection_head.2}
  #allocation0 [shape = 'u32[]', space=smem, size = 0x4, offset = 0x4, fixed_abs, tag = 'smem constant byte address 0x4 - core index']
  #allocation1 [shape = 'u32[144,128]{1,0:T(1,128)}', space=vmem, size = 0x12000, scoped, tag = 'internal scratch']
  %s0 = inlined_call_operand.vmem [shape: f32[2,32,64], index: 0, kind: input, shape index: {}]
  %s1 = inlined_call_operand.vmem [shape: bf16[32,32], index: 1, kind: input, shape index: {}]
  %s2 = inlined_call_operand.vmem [shape: f32[32,1], index: 2, kind: output, shape index: {0}]
  %s3 = inlined_call_operand.vmem [shape: f32[32,1], index: 3, kind: output, shape index: {1}]
  %4 = xla_tuple %s2, %s3
  %s5 = sld [smem:[#allocation0]]
  $region53: #{projection_head.2} parent=0
    _
  %s7 = ssub.s32 1, %s5
  %s8 = scalar_select 0, %s7, %s5
  loop: start=0, step=1, limit=4
  $region2: #{projection_head.2} parent=0 // loop_pre_header
    _
  $region3: #{projection_head.2} parent=0 // loop_header
    %s10 = sphi 0, %s14
    %p11 = scmp.ge.s32.totalorder %s10, 4
    %s17 = sphi 0, %s29
    %s18 = sphi 0, %s25
    %s19 = sphi 0, %s17
    %s20 = sphi 0, %s18
    %s21 = sphi 0, %s19
    %s22 = sphi 0, %s20
    %s34 = sphi 0, %s36
    %s37 = sphi 0, %s34
    %s38 = sphi 0, %s37
    %s54 = sphi 0, %s38
    %s58 = sphi 0, %s58
    %s60 = sphi 0, %s58
    %s61 = sphi 0, %s60
    %s75 = sphi 0, %s61
    %s79 = sphi 0, %s79
    %s81 = sphi 0, %s79
    %s82 = sphi 0, %s81
    %s96 = sphi 0, %s82
    %s100 = sphi 0, %s100
    %s102 = sphi 0, %s100
    %s103 = sphi 0, %s102
    %s117 = sphi 0, %s103
  $region4: #{projection_head.2} parent=0 // loop_header_branch
    %13 = sbr.rel (%p11) target = $region8
  $region5: #{projection_head.2} parent=0 // loop_body
    %s15 = ssub.s32 %s10, 1
    %s16 = ssub.s32 %s10, 2
    %s23 = sadd.s32 1, %s18
    %p24 = scmp.ge.s32.totalorder %s23, 1
    %s25 = scalar_select %p24, 0, %s23
    %s26 = sadd.s32 1, %s17
    %s27 = scalar_select %p24, %s26, %s17
    %p28 = scmp.ge.s32.totalorder %s27, 2
    %s29 = scalar_select %p28, 0, %s27
    %s30 = ssub.s32 %s17, %s29
    %s31 = ssub.s32 %s18, %s25
    %s32 = sor.u32 %s30, %s31
    %p33 = scmp.eq.s32.totalorder %s32, 0
    %s35 = sadd.s32 %s34, 1
    %s36 = scalar_select %p33, %s34, %s35
    %p39 = pneg %p33
    %p40 = scmp.eq.s32.totalorder %s10, 1
    %p41 = por %p39, %p40
    %p42 = scmp.ne.s32.totalorder %s34, %s37
    %p43 = scmp.eq.s32.totalorder %s10, 0
    %p44 = por %p42, %p43
    %p45 = scmp.ne.s32.totalorder %s34, %s37
    %p46 = scmp.eq.s32.totalorder %s15, 1
    %p47 = por %p45, %p46
    %p48 = scmp.ne.s32.totalorder %s37, %s38
    %p49 = scmp.eq.s32.totalorder %s15, 0
    %p50 = por %p48, %p49
    %p51 = scmp.ne.s32.totalorder %s37, %s38
    %p52 = scmp.eq.s32.totalorder %s16, 1
    %p53 = por %p51, %p52
    %p55 = scmp.ne.s32.totalorder %s38, %s54
    %p56 = scmp.eq.s32.totalorder %s16, 0
    %p57 = por %p55, %p56
    %s59 = sadd.s32 %s58, 1
    %p62 = scmp.eq.s32.totalorder %s10, 1
    %p63 = scmp.ne.s32.totalorder %s58, %s60
    %p64 = scmp.eq.s32.totalorder %s10, 0
    %p65 = por %p63, %p64
    %p66 = scmp.ne.s32.totalorder %s58, %s60
    %p67 = scmp.eq.s32.totalorder %s15, 1
    %p68 = por %p66, %p67
    %p69 = scmp.ne.s32.totalorder %s60, %s61
    %p70 = scmp.eq.s32.totalorder %s15, 0
    %p71 = por %p69, %p70
    %p72 = scmp.ne.s32.totalorder %s60, %s61
    %p73 = scmp.eq.s32.totalorder %s16, 1
    %p74 = por %p72, %p73
    %p76 = scmp.ne.s32.totalorder %s61, %s75
    %p77 = scmp.eq.s32.totalorder %s16, 0
    %p78 = por %p76, %p77
    %s80 = sadd.s32 %s79, 1
    %p83 = scmp.eq.s32.totalorder %s10, 1
    %p84 = scmp.ne.s32.totalorder %s79, %s81
    %p85 = scmp.eq.s32.totalorder %s10, 0
    %p86 = por %p84, %p85
    %p87 = scmp.ne.s32.totalorder %s79, %s81
    %p88 = scmp.eq.s32.totalorder %s15, 1
    %p89 = por %p87, %p88
    %p90 = scmp.ne.s32.totalorder %s81, %s82
    %p91 = scmp.eq.s32.totalorder %s15, 0
    %p92 = por %p90, %p91
    %p93 = scmp.ne.s32.totalorder %s81, %s82
    %p94 = scmp.eq.s32.totalorder %s16, 1
    %p95 = por %p93, %p94
    %p97 = scmp.ne.s32.totalorder %s82, %s96
    %p98 = scmp.eq.s32.totalorder %s16, 0
    %p99 = por %p97, %p98
    %s101 = sadd.s32 %s100, 1
    %p104 = scmp.eq.s32.totalorder %s10, 1
    %p105 = scmp.ne.s32.totalorder %s100, %s102
    %p106 = scmp.eq.s32.totalorder %s10, 0
    %p107 = por %p105, %p106
    %p108 = scmp.ne.s32.totalorder %s100, %s102
    %p109 = scmp.eq.s32.totalorder %s15, 1
    %p110 = por %p108, %p109
    %p111 = scmp.ne.s32.totalorder %s102, %s103
    %p112 = scmp.eq.s32.totalorder %s15, 0
    %p113 = por %p111, %p112
    %p114 = scmp.ne.s32.totalorder %s102, %s103
    %p115 = scmp.eq.s32.totalorder %s16, 1
    %p116 = por %p114, %p115
    %p118 = scmp.ne.s32.totalorder %s103, %s117
    %p119 = scmp.eq.s32.totalorder %s16, 0
    %p120 = por %p118, %p119
    %p121 = scmp.le.s32.totalorder 1, %s10
    %p122 = scmp.lt.s32.totalorder %s10, 3
    %p123 = pnand %p121, %p122
    %p124 = pneg %p123
    // Predicated region
    $region9: #{projection_head.2} parent=5 // pred_check
      _
    $region10: #{projection_head.2} parent=5 // pred_check_branch
      %126 = sbr.rel (%p123) target = $region12
    $region11: #{projection_head.2} parent=5 // pred_region
      %s127 = ssub.s32 %s10, 1
      // Predicated region
      $region13: #{projection_head.2} parent=11 // pred_check
        %p128 = pneg %p71
      $region14: #{projection_head.2} parent=11 // pred_check_branch
        %130 = sbr.rel (%p128) target = $region16
      $region15: #{projection_head.2} parent=11 // pred_region
        _
      $region16: #{projection_head.2} parent=11 // pred_fallthru
        _
    $region12: #{projection_head.2} parent=5 // pred_fallthru
      _
    %p131 = scmp.lt.s32.totalorder %s10, 2
    // Predicated region
    $region17: #{projection_head.2} parent=5 // pred_check
      %p132 = pneg %p131
    $region18: #{projection_head.2} parent=5 // pred_check_branch
      %134 = sbr.rel (%p132) target = $region20
    $region19: #{projection_head.2} parent=5 // pred_region
      // Predicated region
      $region21: #{projection_head.2} parent=19 // pred_check
        %p135 = pneg %p44
      $region22: #{projection_head.2} parent=19 // pred_check_branch
        %137 = sbr.rel (%p135) target = $region24
      $region23: #{projection_head.2} parent=19 // pred_region
        %p138 = scmp.lt.s32.totalorder %s17, 1
        %s139 = scalar_select %p138, %s17, 1
        %p140 = scmp.lt.s32.totalorder %s18, 0
        %s141 = scalar_select %p140, %s18, 0
        %s142 = smul.addr %s139, 4
        %s143 = sadd.s32 %s141, %s142
        %s144 = smul.addr %s143, 8
        %s145 = scalar_lea.vmem %s0, %s144
      $region24: #{projection_head.2} parent=19 // pred_fallthru
        _
    $region20: #{projection_head.2} parent=5 // pred_fallthru
      _
    %p146 = scmp.le.s32.totalorder 1, %s10
    %p147 = scmp.lt.s32.totalorder %s10, 3
    %p148 = pnand %p146, %p147
    %p149 = pneg %p148
    // Predicated region
    $region25: #{projection_head.2} parent=5 // pred_check
      _
    $region26: #{projection_head.2} parent=5 // pred_check_branch
      %151 = sbr.rel (%p148) target = $region28
    $region27: #{projection_head.2} parent=5 // pred_region
      %s152 = ssub.s32 %s10, 1
      %p153 = scmp.lt.s32.totalorder %s19, 1
      %s154 = scalar_select %p153, %s19, 1
      %p155 = scmp.lt.s32.totalorder %s20, 0
      %s156 = scalar_select %p155, %s20, 0
      %s157 = smul.addr %s154, 4
      %s158 = sadd.s32 %s156, %s157
      %s159 = smul.addr %s158, 8
      %s160 = scalar_lea.vmem %s0, %s159
      %p161 = pneg %p50
      %p162 = pneg %p47
      %p163 = pneg %p71
      %p164 = pneg %p68
      %p165 = pneg %p92
      %p166 = pneg %p89
      %p167 = pneg %p113
      %p168 = pneg %p110
      %p169 = scmp.lt.s32.totalorder %s19, 1
      %s170 = scalar_select %p169, %s19, 1
      %p171 = scmp.lt.s32.totalorder %s20, 0
      %s172 = scalar_select %p171, %s20, 0
      %s173 = smul.addr %s170, 4
      %s174 = sadd.s32 %s172, %s173
      %s175 = smul.addr %s174, 8
      %s176 = scalar_lea.vmem %s0, %s175
      %p178 = scmp.eq.s32.totalorder %s19, 0
      %p179 = scmp.eq.s32.totalorder %s20, 0
      %p180 = pnand %p178, %p179
      %p181 = pneg %p180
      // Predicated region
      $region29: #{projection_head.2} parent=27 // pred_check
        _
      $region30: #{projection_head.2} parent=27 // pred_check_branch
        %183 = sbr.rel (%p180) target = $region32
      $region31: #{projection_head.2} parent=27 // pred_region
        %vm184 = vcmask 7168
        %185 = vst.msk [vmem:[%s2] sm:$0xff] %vm184, 0.0
        %186 = vst.msk [vmem:[%s2 + $0x8] sm:$0xff] %vm184, 0.0
        %187 = vst.msk [vmem:[%s2 + $0x10] sm:$0xff] %vm184, 0.0
        %188 = vst.msk [vmem:[%s2 + $0x18] sm:$0xff] %vm184, 0.0
        %189 = vst.msk [vmem:[%s3] sm:$0xff] %vm184, 0.0
        %190 = vst.msk [vmem:[%s3 + $0x8] sm:$0xff] %vm184, 0.0
        %191 = vst.msk [vmem:[%s3 + $0x10] sm:$0xff] %vm184, 0.0
        %192 = vst.msk [vmem:[%s3 + $0x18] sm:$0xff] %vm184, 0.0
      $region32: #{projection_head.2} parent=27 // pred_fallthru
        _
      %v193 = vld [vmem:[%s176] sm:$0xff]
      %v194 = vld [vmem:[%s176 + $0x8] sm:$0xff]
      %v195 = vld [vmem:[%s176 + $0x10] sm:$0xff]
      %v196 = vld [vmem:[%s176 + $0x18] sm:$0xff]
      %v197 = vpack.c.bf16 %v194, %v193
      %v198 = vpack.c.bf16 %v196, %v195
      %v199 = vld [vmem:[%s1] sm:$0xf]
      %v200 = vld [vmem:[%s1 + $0x4] sm:$0xf]
      %v201 = vld [vmem:[%s1 + $0x8] sm:$0xf]
      %v202 = vld [vmem:[%s1 + $0xc] sm:$0xf]
      %v207 = vunpack.c.l.b16 %v199
      %v208 = vunpack.c.l.b16 %v200
      %v209 = vunpack.c.l.b16 %v201
      %v210 = vunpack.c.l.b16 %v202
      %v211 = vpack.c.b16 %v208, %v207
      %v212 = vpack.c.b16 %v210, %v209
      %vm213 = vcmask 261120
      %v215 = vsel %vm213, %v211, 0
      %v218 = vsel %vm213, %v212, 0
      %220 = vmatprep.subr.bf16.mxu0 0
      %221 = vmatpush1.bf16.msra.mxu0 0
      %222 = vmatprep.subr.bf16.mxu0 0
      %223 = vmatpush1.bf16.msra.mxu0 0
      %224 = vmatprep.subr.bf16.mxu0 0
      %225 = vmatpush1.bf16.msra.mxu0 0
      %226 = vmatprep.subr.bf16.mxu0 0
      %227 = vmatpush1.bf16.msra.mxu0 0
      %228 = vmatprep.subr.bf16.mxu0 0
      %229 = vmatpush1.bf16.msra.mxu0 0
      %230 = vmatprep.subr.bf16.mxu0 0
      %231 = vmatpush1.bf16.msra.mxu0 0
      %232 = vmatprep.subr.bf16.mxu0 0
      %233 = vmatpush1.bf16.msra.mxu0 %v198
      %234 = vmatprep.subr.bf16.mxu0 0
      %235 = vmatpush1.bf16.msra.mxu0 %v197
      %236 = vmatprep.subr.bf16.mxu0 0
      %237 = vmatpush2.bf16.msra.mxu0 0
      %238 = vmatprep.subr.bf16.mxu0 0
      %239 = vmatpush2.bf16.msra.mxu0 0
      %240 = vmatprep.subr.bf16.mxu0 0
      %241 = vmatpush2.bf16.msra.mxu0 0
      %242 = vmatprep.subr.bf16.mxu0 0
      %243 = vmatpush2.bf16.msra.mxu0 0
      %244 = vmatprep.subr.bf16.mxu0 0
      %245 = vmatpush2.bf16.msra.mxu0 0
      %246 = vmatprep.subr.bf16.mxu0 0
      %247 = vmatpush2.bf16.msra.mxu0 0
      %248 = vmatprep.subr.bf16.mxu0 0
      %249 = vmatpush2.bf16.msra.mxu0 0
      %250 = vmatprep.subr.bf16.mxu0 0
      %251 = vmatpush2.bf16.msra.mxu0 0
      %252 = vmatprep.mubr.bf16.mxu0 0
      %253 = vmatmul.mubr.bf16.gmra.mxu0 %v215
      %v254 = vpop.f32.mrf.mxu0
      %v255 = vadd.f32 0.0, %v254
      %v256 = vpop.f32.mrf.mxu0
      %v257 = vpop.f32.mrf.mxu0
      %v258 = vadd.f32 0.0, %v257
      %v259 = vpop.f32.mrf.mxu0
      %260 = vmatprep.mubr.bf16.mxu0 0
      %261 = vmatmul.mubr.bf16.gmra.mxu0 %v218
      %v262 = vpop.f32.mrf.mxu0
      %v263 = vadd.f32 0.0, %v262
      %v264 = vpop.f32.mrf.mxu0
      %v265 = vpop.f32.mrf.mxu0
      %v266 = vadd.f32 0.0, %v265
      %v267 = vpop.f32.mrf.mxu0
      %268 = vdwg.mxu0
      %v269 = vld [vmem:[%s2] sm:$0xff]
      %v270 = vld [vmem:[%s2 + $0x8] sm:$0xff]
      %v271 = vld [vmem:[%s2 + $0x10] sm:$0xff]
      %v272 = vld [vmem:[%s2 + $0x18] sm:$0xff]
      %vm273 = vcmask 523264
      %v274 = vsel %vm273, %v255, 0.0
      %275 = vadd.xlane.f32.xlu0 %v274
      %v276 = vpop.xlane.xlu0 %275
      %v277 = vsel %vm273, %v258, 0.0
      %278 = vadd.xlane.f32.xlu0 %v277
      %v279 = vpop.xlane.xlu0 %278
      %v280 = vsel %vm273, %v263, 0.0
      %281 = vadd.xlane.f32.xlu0 %v280
      %v282 = vpop.xlane.xlu0 %281
      %v283 = vsel %vm273, %v266, 0.0
      %284 = vadd.xlane.f32.xlu0 %v283
      %v285 = vpop.xlane.xlu0 %284
      %v286 = vadd.f32 %v269, %v276
      %v287 = vadd.f32 %v270, %v279
      %v288 = vadd.f32 %v271, %v282
      %v289 = vadd.f32 %v272, %v285
      %vm290 = vcmask 7168
      %291 = vst.msk [vmem:[%s2] sm:$0xff] %vm290, %v286
      %292 = vst.msk [vmem:[%s2 + $0x8] sm:$0xff] %vm290, %v287
      %293 = vst.msk [vmem:[%s2 + $0x10] sm:$0xff] %vm290, %v288
      %294 = vst.msk [vmem:[%s2 + $0x18] sm:$0xff] %vm290, %v289
      %v295 = vld [vmem:[%s3] sm:$0xff]
      %v296 = vld [vmem:[%s3 + $0x8] sm:$0xff]
      %v297 = vld [vmem:[%s3 + $0x10] sm:$0xff]
      %v298 = vld [vmem:[%s3 + $0x18] sm:$0xff]
      %v299 = vmul.f32 %v255, %v255
      %v300 = vmul.f32 %v258, %v258
      %v301 = vmul.f32 %v263, %v263
      %v302 = vmul.f32 %v266, %v266
      %v303 = vsel %vm273, %v299, 0.0
      %304 = vadd.xlane.f32.xlu0 %v303
      %v305 = vpop.xlane.xlu0 %304
      %v306 = vsel %vm273, %v300, 0.0
      %307 = vadd.xlane.f32.xlu0 %v306
      %v308 = vpop.xlane.xlu0 %307
      %v309 = vsel %vm273, %v301, 0.0
      %310 = vadd.xlane.f32.xlu0 %v309
      %v311 = vpop.xlane.xlu0 %310
      %v312 = vsel %vm273, %v302, 0.0
      %313 = vadd.xlane.f32.xlu0 %v312
      %v314 = vpop.xlane.xlu0 %313
      %v315 = vadd.f32 %v295, %v305
      %v316 = vadd.f32 %v296, %v308
      %v317 = vadd.f32 %v297, %v311
      %v318 = vadd.f32 %v298, %v314
      %319 = vst.msk [vmem:[%s3] sm:$0xff] %vm290, %v315
      %320 = vst.msk [vmem:[%s3 + $0x8] sm:$0xff] %vm290, %v316
      %321 = vst.msk [vmem:[%s3 + $0x10] sm:$0xff] %vm290, %v317
      %322 = vst.msk [vmem:[%s3 + $0x18] sm:$0xff] %vm290, %v318
      // Predicated region
      $region33: #{projection_head.2} parent=27 // pred_check
        %p323 = pneg %p89
      $region34: #{projection_head.2} parent=27 // pred_check_branch
        %325 = sbr.rel (%p323) target = $region36
      $region35: #{projection_head.2} parent=27 // pred_region
        _
      $region36: #{projection_head.2} parent=27 // pred_fallthru
        _
      // Predicated region
      $region37: #{projection_head.2} parent=27 // pred_check
        %p326 = pneg %p110
      $region38: #{projection_head.2} parent=27 // pred_check_branch
        %328 = sbr.rel (%p326) target = $region40
      $region39: #{projection_head.2} parent=27 // pred_region
        _
      $region40: #{projection_head.2} parent=27 // pred_fallthru
        _
      // Predicated region
      $region41: #{projection_head.2} parent=27 // pred_check
        %p329 = pneg %p89
      $region42: #{projection_head.2} parent=27 // pred_check_branch
        %331 = sbr.rel (%p329) target = $region44
      $region43: #{projection_head.2} parent=27 // pred_region
        _
      $region44: #{projection_head.2} parent=27 // pred_fallthru
        _
      // Predicated region
      $region45: #{projection_head.2} parent=27 // pred_check
        %p332 = pneg %p110
      $region46: #{projection_head.2} parent=27 // pred_check_branch
        %334 = sbr.rel (%p332) target = $region48
      $region47: #{projection_head.2} parent=27 // pred_region
        _
      $region48: #{projection_head.2} parent=27 // pred_fallthru
        _
    $region28: #{projection_head.2} parent=5 // pred_fallthru
      _
    %p335 = scmp.le.s32.totalorder 2, %s10
    // Predicated region
    $region49: #{projection_head.2} parent=5 // pred_check
      %p336 = pneg %p335
    $region50: #{projection_head.2} parent=5 // pred_check_branch
      %338 = sbr.rel (%p336) target = $region52
    $region51: #{projection_head.2} parent=5 // pred_region
      %s339 = ssub.s32 %s10, 2
    $region52: #{projection_head.2} parent=5 // pred_fallthru
      _
  $region6: #{projection_head.2} parent=0 // loop_footer
    %s14 = sadd.s32 1, %s10
  $region7: #{projection_head.2} parent=0 // loop_footer_branch
    %9 = sbr.rel target = $region3
  $region8: #{projection_head.2} parent=0 // loop_exit
    _

// kernel: projection_head.3
$region0: #{projection_head.3}
  #allocation0 [shape = 'u32[]', space=smem, size = 0x4, offset = 0x4, fixed_abs, tag = 'smem constant byte address 0x4 - core index']
  #allocation1 [shape = 'u32[144,128]{1,0:T(1,128)}', space=vmem, size = 0x12000, scoped, tag = 'internal scratch']
  %s0 = inlined_call_operand.vmem [shape: f32[2,32,64], index: 0, kind: input, shape index: {}]
  %s1 = inlined_call_operand.vmem [shape: bf16[32,32], index: 1, kind: input, shape index: {}]
  %s2 = inlined_call_operand.vmem [shape: f32[32,1], index: 2, kind: input, shape index: {}]
  %s3 = inlined_call_operand.vmem [shape: f32[32,1], index: 3, kind: input, shape index: {}]
  %s4 = inlined_call_operand.vmem [shape: bf16[64,32], index: 4, kind: input, shape index: {}]
  %s5 = inlined_call_operand.vmem [shape: f32[64,1], index: 5, kind: input, shape index: {}]
  %s6 = inlined_call_operand.vmem [shape: f32[2,64,64], index: 6, kind: output, shape index: {}]
  %s7 = sld [smem:[#allocation0]]
  $region57: #{projection_head.3} parent=0
    _
  %s9 = ssub.s32 1, %s7
  %s10 = scalar_select 0, %s9, %s7
  loop: start=0, step=1, limit=4
  $region2: #{projection_head.3} parent=0 // loop_pre_header
    _
  $region3: #{projection_head.3} parent=0 // loop_header
    %s12 = sphi 0, %s16
    %p13 = scmp.ge.s32.totalorder %s12, 4
    %s19 = sphi 0, %s31
    %s20 = sphi 0, %s27
    %s21 = sphi 0, %s19
    %s22 = sphi 0, %s20
    %s23 = sphi 0, %s21
    %s24 = sphi 0, %s22
    %s36 = sphi 0, %s38
    %s39 = sphi 0, %s36
    %s40 = sphi 0, %s39
    %s56 = sphi 0, %s40
    %s60 = sphi 0, %s60
    %s62 = sphi 0, %s60
    %s63 = sphi 0, %s62
    %s77 = sphi 0, %s63
    %s81 = sphi 0, %s81
    %s83 = sphi 0, %s81
    %s84 = sphi 0, %s83
    %s98 = sphi 0, %s84
    %s102 = sphi 0, %s102
    %s104 = sphi 0, %s102
    %s105 = sphi 0, %s104
    %s119 = sphi 0, %s105
    %s123 = sphi 0, %s123
    %s125 = sphi 0, %s123
    %s126 = sphi 0, %s125
    %s140 = sphi 0, %s126
    %s144 = sphi 0, %s144
    %s146 = sphi 0, %s144
    %s147 = sphi 0, %s146
    %s161 = sphi 0, %s147
    %s169 = sphi 0, %s171
    %s172 = sphi 0, %s169
    %s173 = sphi 0, %s172
    %s189 = sphi 0, %s173
  $region4: #{projection_head.3} parent=0 // loop_header_branch
    %15 = sbr.rel (%p13) target = $region8
  $region5: #{projection_head.3} parent=0 // loop_body
    %s17 = ssub.s32 %s12, 1
    %s18 = ssub.s32 %s12, 2
    %s25 = sadd.s32 1, %s20
    %p26 = scmp.ge.s32.totalorder %s25, 1
    %s27 = scalar_select %p26, 0, %s25
    %s28 = sadd.s32 1, %s19
    %s29 = scalar_select %p26, %s28, %s19
    %p30 = scmp.ge.s32.totalorder %s29, 2
    %s31 = scalar_select %p30, 0, %s29
    %s32 = ssub.s32 %s19, %s31
    %s33 = ssub.s32 %s20, %s27
    %s34 = sor.u32 %s32, %s33
    %p35 = scmp.eq.s32.totalorder %s34, 0
    %s37 = sadd.s32 %s36, 1
    %s38 = scalar_select %p35, %s36, %s37
    %p41 = pneg %p35
    %p42 = scmp.eq.s32.totalorder %s12, 1
    %p43 = por %p41, %p42
    %p44 = scmp.ne.s32.totalorder %s36, %s39
    %p45 = scmp.eq.s32.totalorder %s12, 0
    %p46 = por %p44, %p45
    %p47 = scmp.ne.s32.totalorder %s36, %s39
    %p48 = scmp.eq.s32.totalorder %s17, 1
    %p49 = por %p47, %p48
    %p50 = scmp.ne.s32.totalorder %s39, %s40
    %p51 = scmp.eq.s32.totalorder %s17, 0
    %p52 = por %p50, %p51
    %p53 = scmp.ne.s32.totalorder %s39, %s40
    %p54 = scmp.eq.s32.totalorder %s18, 1
    %p55 = por %p53, %p54
    %p57 = scmp.ne.s32.totalorder %s40, %s56
    %p58 = scmp.eq.s32.totalorder %s18, 0
    %p59 = por %p57, %p58
    %s61 = sadd.s32 %s60, 1
    %p64 = scmp.eq.s32.totalorder %s12, 1
    %p65 = scmp.ne.s32.totalorder %s60, %s62
    %p66 = scmp.eq.s32.totalorder %s12, 0
    %p67 = por %p65, %p66
    %p68 = scmp.ne.s32.totalorder %s60, %s62
    %p69 = scmp.eq.s32.totalorder %s17, 1
    %p70 = por %p68, %p69
    %p71 = scmp.ne.s32.totalorder %s62, %s63
    %p72 = scmp.eq.s32.totalorder %s17, 0
    %p73 = por %p71, %p72
    %p74 = scmp.ne.s32.totalorder %s62, %s63
    %p75 = scmp.eq.s32.totalorder %s18, 1
    %p76 = por %p74, %p75
    %p78 = scmp.ne.s32.totalorder %s63, %s77
    %p79 = scmp.eq.s32.totalorder %s18, 0
    %p80 = por %p78, %p79
    %s82 = sadd.s32 %s81, 1
    %p85 = scmp.eq.s32.totalorder %s12, 1
    %p86 = scmp.ne.s32.totalorder %s81, %s83
    %p87 = scmp.eq.s32.totalorder %s12, 0
    %p88 = por %p86, %p87
    %p89 = scmp.ne.s32.totalorder %s81, %s83
    %p90 = scmp.eq.s32.totalorder %s17, 1
    %p91 = por %p89, %p90
    %p92 = scmp.ne.s32.totalorder %s83, %s84
    %p93 = scmp.eq.s32.totalorder %s17, 0
    %p94 = por %p92, %p93
    %p95 = scmp.ne.s32.totalorder %s83, %s84
    %p96 = scmp.eq.s32.totalorder %s18, 1
    %p97 = por %p95, %p96
    %p99 = scmp.ne.s32.totalorder %s84, %s98
    %p100 = scmp.eq.s32.totalorder %s18, 0
    %p101 = por %p99, %p100
    %s103 = sadd.s32 %s102, 1
    %p106 = scmp.eq.s32.totalorder %s12, 1
    %p107 = scmp.ne.s32.totalorder %s102, %s104
    %p108 = scmp.eq.s32.totalorder %s12, 0
    %p109 = por %p107, %p108
    %p110 = scmp.ne.s32.totalorder %s102, %s104
    %p111 = scmp.eq.s32.totalorder %s17, 1
    %p112 = por %p110, %p111
    %p113 = scmp.ne.s32.totalorder %s104, %s105
    %p114 = scmp.eq.s32.totalorder %s17, 0
    %p115 = por %p113, %p114
    %p116 = scmp.ne.s32.totalorder %s104, %s105
    %p117 = scmp.eq.s32.totalorder %s18, 1
    %p118 = por %p116, %p117
    %p120 = scmp.ne.s32.totalorder %s105, %s119
    %p121 = scmp.eq.s32.totalorder %s18, 0
    %p122 = por %p120, %p121
    %s124 = sadd.s32 %s123, 1
    %p127 = scmp.eq.s32.totalorder %s12, 1
    %p128 = scmp.ne.s32.totalorder %s123, %s125
    %p129 = scmp.eq.s32.totalorder %s12, 0
    %p130 = por %p128, %p129
    %p131 = scmp.ne.s32.totalorder %s123, %s125
    %p132 = scmp.eq.s32.totalorder %s17, 1
    %p133 = por %p131, %p132
    %p134 = scmp.ne.s32.totalorder %s125, %s126
    %p135 = scmp.eq.s32.totalorder %s17, 0
    %p136 = por %p134, %p135
    %p137 = scmp.ne.s32.totalorder %s125, %s126
    %p138 = scmp.eq.s32.totalorder %s18, 1
    %p139 = por %p137, %p138
    %p141 = scmp.ne.s32.totalorder %s126, %s140
    %p142 = scmp.eq.s32.totalorder %s18, 0
    %p143 = por %p141, %p142
    %s145 = sadd.s32 %s144, 1
    %p148 = scmp.eq.s32.totalorder %s12, 1
    %p149 = scmp.ne.s32.totalorder %s144, %s146
    %p150 = scmp.eq.s32.totalorder %s12, 0
    %p151 = por %p149, %p150
    %p152 = scmp.ne.s32.totalorder %s144, %s146
    %p153 = scmp.eq.s32.totalorder %s17, 1
    %p154 = por %p152, %p153
    %p155 = scmp.ne.s32.totalorder %s146, %s147
    %p156 = scmp.eq.s32.totalorder %s17, 0
    %p157 = por %p155, %p156
    %p158 = scmp.ne.s32.totalorder %s146, %s147
    %p159 = scmp.eq.s32.totalorder %s18, 1
    %p160 = por %p158, %p159
    %p162 = scmp.ne.s32.totalorder %s147, %s161
    %p163 = scmp.eq.s32.totalorder %s18, 0
    %p164 = por %p162, %p163
    %s165 = ssub.s32 %s19, %s31
    %s166 = ssub.s32 %s20, %s27
    %s167 = sor.u32 %s165, %s166
    %p168 = scmp.eq.s32.totalorder %s167, 0
    %s170 = sadd.s32 %s169, 1
    %s171 = scalar_select %p168, %s169, %s170
    %p174 = pneg %p168
    %p175 = scmp.eq.s32.totalorder %s12, 1
    %p176 = por %p174, %p175
    %p177 = scmp.ne.s32.totalorder %s169, %s172
    %p178 = scmp.eq.s32.totalorder %s12, 0
    %p179 = por %p177, %p178
    %p180 = scmp.ne.s32.totalorder %s169, %s172
    %p181 = scmp.eq.s32.totalorder %s17, 1
    %p182 = por %p180, %p181
    %p183 = scmp.ne.s32.totalorder %s172, %s173
    %p184 = scmp.eq.s32.totalorder %s17, 0
    %p185 = por %p183, %p184
    %p186 = scmp.ne.s32.totalorder %s172, %s173
    %p187 = scmp.eq.s32.totalorder %s18, 1
    %p188 = por %p186, %p187
    %p190 = scmp.ne.s32.totalorder %s173, %s189
    %p191 = scmp.eq.s32.totalorder %s18, 0
    %p192 = por %p190, %p191
    %p193 = scmp.le.s32.totalorder 1, %s12
    %p194 = scmp.lt.s32.totalorder %s12, 3
    %p195 = pnand %p193, %p194
    %p196 = pneg %p195
    // Predicated region
    $region9: #{projection_head.3} parent=5 // pred_check
      _
    $region10: #{projection_head.3} parent=5 // pred_check_branch
      %198 = sbr.rel (%p195) target = $region12
    $region11: #{projection_head.3} parent=5 // pred_region
      %s199 = ssub.s32 %s12, 1
      // Predicated region
      $region13: #{projection_head.3} parent=11 // pred_check
        %p200 = pneg %p73
      $region14: #{projection_head.3} parent=11 // pred_check_branch
        %202 = sbr.rel (%p200) target = $region16
      $region15: #{projection_head.3} parent=11 // pred_region
        _
      $region16: #{projection_head.3} parent=11 // pred_fallthru
        _
      // Predicated region
      $region17: #{projection_head.3} parent=11 // pred_check
        %p203 = pneg %p94
      $region18: #{projection_head.3} parent=11 // pred_check_branch
        %205 = sbr.rel (%p203) target = $region20
      $region19: #{projection_head.3} parent=11 // pred_region
        _
      $region20: #{projection_head.3} parent=11 // pred_fallthru
        _
      // Predicated region
      $region21: #{projection_head.3} parent=11 // pred_check
        %p206 = pneg %p115
      $region22: #{projection_head.3} parent=11 // pred_check_branch
        %208 = sbr.rel (%p206) target = $region24
      $region23: #{projection_head.3} parent=11 // pred_region
        _
      $region24: #{projection_head.3} parent=11 // pred_fallthru
        _
      // Predicated region
      $region25: #{projection_head.3} parent=11 // pred_check
        %p209 = pneg %p136
      $region26: #{projection_head.3} parent=11 // pred_check_branch
        %211 = sbr.rel (%p209) target = $region28
      $region27: #{projection_head.3} parent=11 // pred_region
        _
      $region28: #{projection_head.3} parent=11 // pred_fallthru
        _
      // Predicated region
      $region29: #{projection_head.3} parent=11 // pred_check
        %p212 = pneg %p157
      $region30: #{projection_head.3} parent=11 // pred_check_branch
        %214 = sbr.rel (%p212) target = $region32
      $region31: #{projection_head.3} parent=11 // pred_region
        _
      $region32: #{projection_head.3} parent=11 // pred_fallthru
        _
    $region12: #{projection_head.3} parent=5 // pred_fallthru
      _
    %p215 = scmp.lt.s32.totalorder %s12, 2
    // Predicated region
    $region33: #{projection_head.3} parent=5 // pred_check
      %p216 = pneg %p215
    $region34: #{projection_head.3} parent=5 // pred_check_branch
      %218 = sbr.rel (%p216) target = $region36
    $region35: #{projection_head.3} parent=5 // pred_region
      // Predicated region
      $region37: #{projection_head.3} parent=35 // pred_check
        %p219 = pneg %p46
      $region38: #{projection_head.3} parent=35 // pred_check_branch
        %221 = sbr.rel (%p219) target = $region40
      $region39: #{projection_head.3} parent=35 // pred_region
        %p222 = scmp.lt.s32.totalorder %s19, 1
        %s223 = scalar_select %p222, %s19, 1
        %p224 = scmp.lt.s32.totalorder %s20, 0
        %s225 = scalar_select %p224, %s20, 0
        %s226 = smul.addr %s223, 4
        %s227 = sadd.s32 %s225, %s226
        %s228 = smul.addr %s227, 8
        %s229 = scalar_lea.vmem %s0, %s228
      $region40: #{projection_head.3} parent=35 // pred_fallthru
        _
    $region36: #{projection_head.3} parent=5 // pred_fallthru
      _
    %p230 = scmp.le.s32.totalorder 1, %s12
    %p231 = scmp.lt.s32.totalorder %s12, 3
    %p232 = pnand %p230, %p231
    %p233 = pneg %p232
    // Predicated region
    $region41: #{projection_head.3} parent=5 // pred_check
      _
    $region42: #{projection_head.3} parent=5 // pred_check_branch
      %235 = sbr.rel (%p232) target = $region44
    $region43: #{projection_head.3} parent=5 // pred_region
      %s236 = ssub.s32 %s12, 1
      %p237 = scmp.lt.s32.totalorder %s21, 1
      %s238 = scalar_select %p237, %s21, 1
      %p239 = scmp.lt.s32.totalorder %s22, 0
      %s240 = scalar_select %p239, %s22, 0
      %s241 = smul.addr %s238, 4
      %s242 = sadd.s32 %s240, %s241
      %s243 = smul.addr %s242, 8
      %s244 = scalar_lea.vmem %s0, %s243
      %p245 = pneg %p52
      %p246 = pneg %p49
      %p247 = pneg %p73
      %p248 = pneg %p70
      %p249 = pneg %p94
      %p250 = pneg %p91
      %p251 = pneg %p115
      %p252 = pneg %p112
      %p253 = pneg %p136
      %p254 = pneg %p133
      %p255 = pneg %p157
      %p256 = pneg %p154
      %p257 = pneg %p185
      %p258 = pneg %p182
      %p259 = scmp.lt.s32.totalorder %s21, 1
      %s260 = scalar_select %p259, %s21, 1
      %p261 = scmp.lt.s32.totalorder %s22, 0
      %s262 = scalar_select %p261, %s22, 0
      %s263 = smul.addr %s260, 8
      %s264 = sadd.s32 %s262, %s263
      %s265 = smul.addr %s264, 8
      %s266 = scalar_lea.vmem %s6, %s265
      %p267 = scmp.lt.s32.totalorder %s21, 1
      %s268 = scalar_select %p267, %s21, 1
      %p269 = scmp.lt.s32.totalorder %s22, 0
      %s270 = scalar_select %p269, %s22, 0
      %s271 = smul.addr %s268, 4
      %s272 = sadd.s32 %s270, %s271
      %s273 = smul.addr %s272, 8
      %s274 = scalar_lea.vmem %s0, %s273
      %p275 = scmp.lt.s32.totalorder %s21, 1
      %s276 = scalar_select %p275, %s21, 1
      %p277 = scmp.lt.s32.totalorder %s22, 0
      %s278 = scalar_select %p277, %s22, 0
      %s279 = smul.addr %s276, 8
      %s280 = sadd.s32 %s278, %s279
      %s281 = smul.addr %s280, 8
      %s282 = scalar_lea.vmem %s6, %s281
      %v284 = vld [vmem:[%s274] sm:$0xff]
      %v285 = vld [vmem:[%s274 + $0x8] sm:$0xff]
      %v286 = vld [vmem:[%s274 + $0x10] sm:$0xff]
      %v287 = vld [vmem:[%s274 + $0x18] sm:$0xff]
      %v288 = vpack.c.bf16 %v285, %v284
      %v289 = vpack.c.bf16 %v287, %v286
      %v290 = vld [vmem:[%s1] sm:$0xf]
      %v291 = vld [vmem:[%s1 + $0x4] sm:$0xf]
      %v292 = vld [vmem:[%s1 + $0x8] sm:$0xf]
      %v293 = vld [vmem:[%s1 + $0xc] sm:$0xf]
      %v298 = vunpack.c.l.b16 %v290
      %v299 = vunpack.c.l.b16 %v291
      %v300 = vunpack.c.l.b16 %v292
      %v301 = vunpack.c.l.b16 %v293
      %v302 = vpack.c.b16 %v299, %v298
      %v303 = vpack.c.b16 %v301, %v300
      %vm304 = vcmask 261120
      %v306 = vsel %vm304, %v302, 0
      %v309 = vsel %vm304, %v303, 0
      %311 = vmatprep.subr.bf16.mxu0 0
      %312 = vmatpush1.bf16.msra.mxu0 0
      %313 = vmatprep.subr.bf16.mxu0 0
      %314 = vmatpush1.bf16.msra.mxu0 0
      %315 = vmatprep.subr.bf16.mxu0 0
      %316 = vmatpush1.bf16.msra.mxu0 0
      %317 = vmatprep.subr.bf16.mxu0 0
      %318 = vmatpush1.bf16.msra.mxu0 0
      %319 = vmatprep.subr.bf16.mxu0 0
      %320 = vmatpush1.bf16.msra.mxu0 0
      %321 = vmatprep.subr.bf16.mxu0 0
      %322 = vmatpush1.bf16.msra.mxu0 0
      %323 = vmatprep.subr.bf16.mxu0 0
      %324 = vmatpush1.bf16.msra.mxu0 %v289
      %325 = vmatprep.subr.bf16.mxu0 0
      %326 = vmatpush1.bf16.msra.mxu0 %v288
      %327 = vmatprep.subr.bf16.mxu0 0
      %328 = vmatpush2.bf16.msra.mxu0 0
      %329 = vmatprep.subr.bf16.mxu0 0
      %330 = vmatpush2.bf16.msra.mxu0 0
      %331 = vmatprep.subr.bf16.mxu0 0
      %332 = vmatpush2.bf16.msra.mxu0 0
      %333 = vmatprep.subr.bf16.mxu0 0
      %334 = vmatpush2.bf16.msra.mxu0 0
      %335 = vmatprep.subr.bf16.mxu0 0
      %336 = vmatpush2.bf16.msra.mxu0 0
      %337 = vmatprep.subr.bf16.mxu0 0
      %338 = vmatpush2.bf16.msra.mxu0 0
      %339 = vmatprep.subr.bf16.mxu0 0
      %340 = vmatpush2.bf16.msra.mxu0 0
      %341 = vmatprep.subr.bf16.mxu0 0
      %342 = vmatpush2.bf16.msra.mxu0 0
      %343 = vmatprep.mubr.bf16.mxu0 0
      %344 = vmatmul.mubr.bf16.gmra.mxu0 %v306
      %v345 = vpop.f32.mrf.mxu0
      %v346 = vadd.f32 0.0, %v345
      %v347 = vpop.f32.mrf.mxu0
      %v348 = vpop.f32.mrf.mxu0
      %v349 = vadd.f32 0.0, %v348
      %v350 = vpop.f32.mrf.mxu0
      %351 = vmatprep.mubr.bf16.mxu0 0
      %352 = vmatmul.mubr.bf16.gmra.mxu0 %v309
      %v353 = vpop.f32.mrf.mxu0
      %v354 = vadd.f32 0.0, %v353
      %v355 = vpop.f32.mrf.mxu0
      %v356 = vpop.f32.mrf.mxu0
      %v357 = vadd.f32 0.0, %v356
      %v358 = vpop.f32.mrf.mxu0
      %359 = vdwg.mxu0
      %v360 = vld [vmem:[%s2] sm:$0xff]
      %v361 = vld [vmem:[%s2 + $0x8] sm:$0xff]
      %v362 = vld [vmem:[%s2 + $0x10] sm:$0xff]
      %v363 = vld [vmem:[%s2 + $0x18] sm:$0xff]
      %365 = vset.pattern.permute.xlu0 0
      %366 = vperm.xlu0 %365, %v360
      %v367 = vpop.permute.xlu0 %366
      %370 = vset.pattern.permute.xlu0 0
      %371 = vperm.xlu0 %370, %v361
      %v372 = vpop.permute.xlu0 %371
      %375 = vset.pattern.permute.xlu0 0
      %376 = vperm.xlu0 %375, %v362
      %v377 = vpop.permute.xlu0 %376
      %380 = vset.pattern.permute.xlu0 0
      %381 = vperm.xlu0 %380, %v363
      %v382 = vpop.permute.xlu0 %381
      %v384 = vmul.f32 %v346, %v367
      %v385 = vmul.f32 %v349, %v372
      %v386 = vmul.f32 %v354, %v377
      %v387 = vmul.f32 %v357, %v382
      %v388 = vld [vmem:[%s3] sm:$0xff]
      %v389 = vld [vmem:[%s3 + $0x8] sm:$0xff]
      %v390 = vld [vmem:[%s3 + $0x10] sm:$0xff]
      %v391 = vld [vmem:[%s3 + $0x18] sm:$0xff]
      %393 = vset.pattern.permute.xlu0 0
      %394 = vperm.xlu0 %393, %v388
      %v395 = vpop.permute.xlu0 %394
      %398 = vset.pattern.permute.xlu0 0
      %399 = vperm.xlu0 %398, %v389
      %v400 = vpop.permute.xlu0 %399
      %403 = vset.pattern.permute.xlu0 0
      %404 = vperm.xlu0 %403, %v390
      %v405 = vpop.permute.xlu0 %404
      %408 = vset.pattern.permute.xlu0 0
      %409 = vperm.xlu0 %408, %v391
      %v410 = vpop.permute.xlu0 %409
      %v412 = vadd.f32 %v384, %v395
      %v413 = vadd.f32 %v385, %v400
      %v414 = vadd.f32 %v386, %v405
      %v415 = vadd.f32 %v387, %v410
      %v416 = vmax.f32 %v412, 0.0
      %v417 = vmax.f32 %v413, 0.0
      %v418 = vmax.f32 %v414, 0.0
      %v419 = vmax.f32 %v415, 0.0
      %v420 = vld [vmem:[%s4] sm:$0xf]
      %v421 = vld [vmem:[%s4 + $0x4] sm:$0xf]
      %v422 = vld [vmem:[%s4 + $0x8] sm:$0xf]
      %v423 = vld [vmem:[%s4 + $0xc] sm:$0xf]
      %v424 = vld [vmem:[%s4 + $0x10] sm:$0xf]
      %v425 = vld [vmem:[%s4 + $0x14] sm:$0xf]
      %v426 = vld [vmem:[%s4 + $0x18] sm:$0xf]
      %v427 = vld [vmem:[%s4 + $0x1c] sm:$0xf]
      %v428 = vpack.c.bf16 %v417, %v416
      %v429 = vpack.c.bf16 %v419, %v418
      %v430 = vld [vmem:[%s5] sm:$0xff]
      %v431 = vld [vmem:[%s5 + $0x8] sm:$0xff]
      %v432 = vld [vmem:[%s5 + $0x10] sm:$0xff]
      %v433 = vld [vmem:[%s5 + $0x18] sm:$0xff]
      %v434 = vld [vmem:[%s5 + $0x20] sm:$0xff]
      %v435 = vld [vmem:[%s5 + $0x28] sm:$0xff]
      %v436 = vld [vmem:[%s5 + $0x30] sm:$0xff]
      %v437 = vld [vmem:[%s5 + $0x38] sm:$0xff]
      %439 = vset.pattern.permute.xlu0 0
      %440 = vperm.xlu0 %439, %v430
      %v441 = vpop.permute.xlu0 %440
      %444 = vset.pattern.permute.xlu0 0
      %445 = vperm.xlu0 %444, %v431
      %v446 = vpop.permute.xlu0 %445
      %449 = vset.pattern.permute.xlu0 0
      %450 = vperm.xlu0 %449, %v432
      %v451 = vpop.permute.xlu0 %450
      %454 = vset.pattern.permute.xlu0 0
      %455 = vperm.xlu0 %454, %v433
      %v456 = vpop.permute.xlu0 %455
      %459 = vset.pattern.permute.xlu0 0
      %460 = vperm.xlu0 %459, %v434
      %v461 = vpop.permute.xlu0 %460
      %464 = vset.pattern.permute.xlu0 0
      %465 = vperm.xlu0 %464, %v435
      %v466 = vpop.permute.xlu0 %465
      %469 = vset.pattern.permute.xlu0 0
      %470 = vperm.xlu0 %469, %v436
      %v471 = vpop.permute.xlu0 %470
      %474 = vset.pattern.permute.xlu0 0
      %475 = vperm.xlu0 %474, %v437
      %v476 = vpop.permute.xlu0 %475
      %v486 = vunpack.c.l.b16 %v420
      %v487 = vunpack.c.l.b16 %v421
      %v488 = vunpack.c.l.b16 %v422
      %v489 = vunpack.c.l.b16 %v423
      %v490 = vunpack.c.l.b16 %v424
      %v491 = vunpack.c.l.b16 %v425
      %v492 = vunpack.c.l.b16 %v426
      %v493 = vunpack.c.l.b16 %v427
      %v494 = vpack.c.b16 %v487, %v486
      %v495 = vpack.c.b16 %v489, %v488
      %v496 = vpack.c.b16 %v491, %v490
      %v497 = vpack.c.b16 %v493, %v492
      %v499 = vsel %vm304, %v494, 0
      %v502 = vsel %vm304, %v495, 0
      %v505 = vsel %vm304, %v496, 0
      %v508 = vsel %vm304, %v497, 0
      %510 = vmatprep.subr.bf16.mxu0 0
      %511 = vmatpush1.bf16.msra.mxu0 0
      %512 = vmatprep.subr.bf16.mxu0 0
      %513 = vmatpush1.bf16.msra.mxu0 0
      %514 = vmatprep.subr.bf16.mxu0 0
      %515 = vmatpush1.bf16.msra.mxu0 0
      %516 = vmatprep.subr.bf16.mxu0 0
      %517 = vmatpush1.bf16.msra.mxu0 0
      %518 = vmatprep.subr.bf16.mxu0 0
      %519 = vmatpush1.bf16.msra.mxu0 0
      %520 = vmatprep.subr.bf16.mxu0 0
      %521 = vmatpush1.bf16.msra.mxu0 0
      %522 = vmatprep.subr.bf16.mxu0 0
      %523 = vmatpush1.bf16.msra.mxu0 %v429
      %524 = vmatprep.subr.bf16.mxu0 0
      %525 = vmatpush1.bf16.msra.mxu0 %v428
      %526 = vmatprep.subr.bf16.mxu0 0
      %527 = vmatpush2.bf16.msra.mxu0 0
      %528 = vmatprep.subr.bf16.mxu0 0
      %529 = vmatpush2.bf16.msra.mxu0 0
      %530 = vmatprep.subr.bf16.mxu0 0
      %531 = vmatpush2.bf16.msra.mxu0 0
      %532 = vmatprep.subr.bf16.mxu0 0
      %533 = vmatpush2.bf16.msra.mxu0 0
      %534 = vmatprep.subr.bf16.mxu0 0
      %535 = vmatpush2.bf16.msra.mxu0 0
      %536 = vmatprep.subr.bf16.mxu0 0
      %537 = vmatpush2.bf16.msra.mxu0 0
      %538 = vmatprep.subr.bf16.mxu0 0
      %539 = vmatpush2.bf16.msra.mxu0 0
      %540 = vmatprep.subr.bf16.mxu0 0
      %541 = vmatpush2.bf16.msra.mxu0 0
      %542 = vmatprep.mubr.bf16.mxu0 0
      %543 = vmatmul.mubr.bf16.gmra.mxu0 %v499
      %v544 = vpop.f32.mrf.mxu0
      %v545 = vadd.f32 %v441, %v544
      %v546 = vpop.f32.mrf.mxu0
      %v547 = vpop.f32.mrf.mxu0
      %v548 = vadd.f32 %v446, %v547
      %v549 = vpop.f32.mrf.mxu0
      %550 = vmatprep.mubr.bf16.mxu0 0
      %551 = vmatmul.mubr.bf16.gmra.mxu0 %v502
      %v552 = vpop.f32.mrf.mxu0
      %v553 = vadd.f32 %v451, %v552
      %v554 = vpop.f32.mrf.mxu0
      %v555 = vpop.f32.mrf.mxu0
      %v556 = vadd.f32 %v456, %v555
      %v557 = vpop.f32.mrf.mxu0
      %558 = vmatprep.mubr.bf16.mxu0 0
      %559 = vmatmul.mubr.bf16.gmra.mxu0 %v505
      %v560 = vpop.f32.mrf.mxu0
      %v561 = vadd.f32 %v461, %v560
      %v562 = vpop.f32.mrf.mxu0
      %v563 = vpop.f32.mrf.mxu0
      %v564 = vadd.f32 %v466, %v563
      %v565 = vpop.f32.mrf.mxu0
      %566 = vmatprep.mubr.bf16.mxu0 0
      %567 = vmatmul.mubr.bf16.gmra.mxu0 %v508
      %v568 = vpop.f32.mrf.mxu0
      %v569 = vadd.f32 %v471, %v568
      %v570 = vpop.f32.mrf.mxu0
      %v571 = vpop.f32.mrf.mxu0
      %v572 = vadd.f32 %v476, %v571
      %v573 = vpop.f32.mrf.mxu0
      %574 = vdwg.mxu0
      %v575 = vmul.f32 %v545, %v545
      %v576 = vmul.f32 %v548, %v548
      %v577 = vmul.f32 %v553, %v553
      %v578 = vmul.f32 %v556, %v556
      %v579 = vmul.f32 %v561, %v561
      %v580 = vmul.f32 %v564, %v564
      %v581 = vmul.f32 %v569, %v569
      %v582 = vmul.f32 %v572, %v572
      %vm583 = vcmask 523264
      %v584 = vsel %vm583, %v575, 0.0
      %v585 = vsel %vm583, %v576, 0.0
      %v586 = vadd.f32 %v584, %v585
      %v587 = vsel %vm583, %v577, 0.0
      %v588 = vadd.f32 %v586, %v587
      %v589 = vsel %vm583, %v578, 0.0
      %v590 = vadd.f32 %v588, %v589
      %v591 = vsel %vm583, %v579, 0.0
      %v592 = vadd.f32 %v590, %v591
      %v593 = vsel %vm583, %v580, 0.0
      %v594 = vadd.f32 %v592, %v593
      %v595 = vsel %vm583, %v581, 0.0
      %v596 = vadd.f32 %v594, %v595
      %v597 = vsel %vm583, %v582, 0.0
      %v598 = vadd.f32 %v596, %v597
      %v599 = vrot.slane %v598, 4
      %v600 = vadd.f32 %v598, %v599
      %v601 = vrot.slane %v600, 2
      %v602 = vadd.f32 %v600, %v601
      %v603 = vrot.slane %v602, 1
      %v604 = vadd.f32 %v602, %v603
      %v605 = vmax.f32 %v604, 1e-24
      %v606 = vrsqrt.pop %v605
      %v607 = vmul.f32 %v545, %v606
      %v608 = vmul.f32 %v548, %v606
      %v609 = vmul.f32 %v553, %v606
      %v610 = vmul.f32 %v556, %v606
      %v611 = vmul.f32 %v561, %v606
      %v612 = vmul.f32 %v564, %v606
      %v613 = vmul.f32 %v569, %v606
      %v614 = vmul.f32 %v572, %v606
      %615 = vst.msk [vmem:[%s282] sm:$0xff] %vm583, %v607
      %616 = vst.msk [vmem:[%s282 + $0x8] sm:$0xff] %vm583, %v608
      %617 = vst.msk [vmem:[%s282 + $0x10] sm:$0xff] %vm583, %v609
      %618 = vst.msk [vmem:[%s282 + $0x18] sm:$0xff] %vm583, %v610
      %619 = vst.msk [vmem:[%s282 + $0x20] sm:$0xff] %vm583, %v611
      %620 = vst.msk [vmem:[%s282 + $0x28] sm:$0xff] %vm583, %v612
      %621 = vst.msk [vmem:[%s282 + $0x30] sm:$0xff] %vm583, %v613
      %622 = vst.msk [vmem:[%s282 + $0x38] sm:$0xff] %vm583, %v614
      %p623 = scmp.lt.s32.totalorder %s21, 1
      %s624 = scalar_select %p623, %s21, 1
      %p625 = scmp.lt.s32.totalorder %s22, 0
      %s626 = scalar_select %p625, %s22, 0
      %s627 = smul.addr %s624, 8
      %s628 = sadd.s32 %s626, %s627
      %s629 = smul.addr %s628, 8
      %s630 = scalar_lea.vmem %s6, %s629
      // Predicated region
      $region45: #{projection_head.3} parent=43 // pred_check
        %p631 = pneg %p182
      $region46: #{projection_head.3} parent=43 // pred_check_branch
        %633 = sbr.rel (%p631) target = $region48
      $region47: #{projection_head.3} parent=43 // pred_region
        _
      $region48: #{projection_head.3} parent=43 // pred_fallthru
        _
    $region44: #{projection_head.3} parent=5 // pred_fallthru
      _
    %p634 = scmp.le.s32.totalorder 2, %s12
    // Predicated region
    $region49: #{projection_head.3} parent=5 // pred_check
      %p635 = pneg %p634
    $region50: #{projection_head.3} parent=5 // pred_check_branch
      %637 = sbr.rel (%p635) target = $region52
    $region51: #{projection_head.3} parent=5 // pred_region
      %s638 = ssub.s32 %s12, 2
      // Predicated region
      $region53: #{projection_head.3} parent=51 // pred_check
        %p639 = pneg %p188
      $region54: #{projection_head.3} parent=51 // pred_check_branch
        %641 = sbr.rel (%p639) target = $region56
      $region55: #{projection_head.3} parent=51 // pred_region
        %p642 = scmp.lt.s32.totalorder %s23, 1
        %s643 = scalar_select %p642, %s23, 1
        %p644 = scmp.lt.s32.totalorder %s24, 0
        %s645 = scalar_select %p644, %s24, 0
        %s646 = smul.addr %s643, 8
        %s647 = sadd.s32 %s645, %s646
        %s648 = smul.addr %s647, 8
        %s649 = scalar_lea.vmem %s6, %s648
      $region56: #{projection_head.3} parent=51 // pred_fallthru
        _
    $region52: #{projection_head.3} parent=5 // pred_fallthru
      _
  $region6: #{projection_head.3} parent=0 // loop_footer
    %s16 = sadd.s32 1, %s12
  $region7: #{projection_head.3} parent=0 // loop_footer_branch
    %11 = sbr.rel target = $region3
  $region8: #{projection_head.3} parent=0 // loop_exit
    _

</llo_original>
